<compile_context>
chip_gen: v6e
topology: v6e:2x2x1
jax: 0.10.0
libtpu: 0.0.40
codegen_flags: <defaults>
</compile_context>

<pallas_src>
import math

import jax
import jax.numpy as jnp
from jax.experimental import pallas as pl
from jax.experimental.pallas import tpu as pltpu

_LANES = 128


def _device_defaults():
    """Generation-aware (num_cores_grid, block_rows, vmem_limit_bytes)."""
    try:
        kind = jax.devices()[0].device_kind.lower()
    except Exception:
        kind = ""
    if "v7" in kind or "tpu7" in kind:
        # 2 TensorCores, ~3.2 TB/s HBM: 4 MiB/input/step tiles; raise scoped VMEM
        # so the 16 MiB double-buffered working set is accepted (64 MiB physical).
        return 2, 8192, 40 << 20
    if "v6" in kind:
        return 1, 8192, 40 << 20
    # v5e / older / unknown: 2 MiB/input/step keeps the double-buffered working
    # set (~8 MiB) inside the 16 MiB scoped-VMEM default.
    return 1, 4096, None


def _make_sq_sum_kernel(rows_valid, block_rows, steps_per_core, maybe_ragged):
    """Accumulate sum((dr-cl)^2) into a per-core resident (1, 8, 128) block."""

    def kernel(dr_ref, cl_ref, out_ref):
        c = pl.program_id(0)   # core / parallel axis
        i = pl.program_id(1)   # streaming / reduction axis

        @pl.when(i == 0)
        def _():
            out_ref[...] = jnp.zeros_like(out_ref)

        # Cast in-kernel: narrow dtypes stay narrow in HBM (the dominant cost).
        d = dr_ref[...].astype(jnp.float32) - cl_ref[...].astype(jnp.float32)
        sq = d * d

        def _accum(x):
            # Reduce only along groups of 8 sublanes (pure vreg adds on the VPU);
            # the single cross-lane reduction happens once, in the wrapper.
            out_ref[...] += x.reshape(block_rows // 8, 8, _LANES).sum(axis=0)[None]

        if not maybe_ragged:
            _accum(sq)
        else:
            blk = c * steps_per_core + i
            row_start = blk * block_rows
            is_ragged = row_start + block_rows > rows_valid

            @pl.when(jnp.logical_not(is_ragged))
            def _():
                _accum(sq)

            @pl.when(is_ragged)
            def _():
                # jnp.where (select), NOT multiply-by-mask: rows past the array
                # end may contain garbage/NaN which a multiply would propagate.
                row_ids = row_start + jax.lax.broadcasted_iota(
                    jnp.int32, (block_rows, _LANES), 0
                )
                _accum(jnp.where(row_ids < rows_valid, sq, 0.0))

    return kernel


def psnr_loss(dr, cl, data_range=1.0, block_rows=None, force_num_cores=None):
    assert dr.shape == cl.shape, (dr.shape, cl.shape)
    total = math.prod(dr.shape)
    dr2 = float(data_range) ** 2

    num_cores, default_br, vmem_limit = _device_defaults()
    if block_rows is None:
        block_rows = default_br
    if force_num_cores is not None:
        num_cores = int(force_num_cores)

    dr_f = jnp.reshape(dr, (-1,))
    cl_f = jnp.reshape(cl, (-1,))

    rows = -(-total // _LANES)                 # ceil(total / 128)
    pad = rows * _LANES - total
    if pad:
        # Lane-ragged tail: zero-pad BOTH inputs so the padded diff is exactly 0
        # and contributes nothing. Costs one extra full-array HBM copy.
        dr_f = jnp.pad(dr_f, (0, pad))
        cl_f = jnp.pad(cl_f, (0, pad))

    dr2d = dr_f.reshape(rows, _LANES)
    cl2d = cl_f.reshape(rows, _LANES)

    # Sublane multiple depends on dtype packing: f32 -> 8, bf16 -> 16, 8-bit -> 32.
    itemsize = int(jnp.dtype(dr.dtype).itemsize)
    sub = max(8, 32 // max(itemsize, 1))
    rows_up = -(-rows // sub) * sub
    br = max(sub, min(int(block_rows), rows_up))
    br = -(-br // sub) * sub

    n_steps = -(-rows // br)
    if n_steps < 2:
        num_cores = 1
    num_cores = max(1, int(num_cores))
    spc = -(-n_steps // num_cores)             # grid steps per core

    # True if any scheduled block is only partially (or not at all) inside rows.
    maybe_ragged = (num_cores * spc * br) != rows

    kernel = _make_sq_sum_kernel(rows, br, spc, maybe_ragged)

    cp_kwargs = dict(dimension_semantics=("parallel", "arbitrary"))
    if vmem_limit is not None:
        cp_kwargs["vmem_limit_bytes"] = int(vmem_limit)

    partial = pl.pallas_call(
        kernel,
        out_shape=jax.ShapeDtypeStruct((num_cores, 8, _LANES), jnp.float32),
        grid_spec=pltpu.PrefetchScalarGridSpec(
            num_scalar_prefetch=0,
            grid=(num_cores, spc),
            in_specs=[
                pl.BlockSpec((br, _LANES), lambda c, i, _s=spc: (c * _s + i, 0)),
                pl.BlockSpec((br, _LANES), lambda c, i, _s=spc: (c * _s + i, 0)),
            ],
            out_specs=pl.BlockSpec((1, 8, _LANES), lambda c, i: (c, 0, 0)),
        ),
        compiler_params=pltpu.CompilerParams(**cp_kwargs),
    )(dr2d, cl2d)

    sq_sum = jnp.sum(partial, dtype=jnp.float32)   # single cross-lane reduce
    mse = sq_sum / jnp.float32(total)
    psnr = 10.0 * jnp.log10(dr2 / mse)
    return -psnr


def _ref_loss(a, b, data_range=1.0):
    mse = jnp.mean((a.astype(jnp.float32) - b.astype(jnp.float32)) ** 2)
    return -(10.0 * jnp.log10(float(data_range) ** 2 / mse))


if __name__ == "__main__":
    key = jax.random.PRNGKey(0)
    k1, k2 = jax.random.split(key)
    # NCHW inputs, e.g. degraded / clean image batch
    dr = jax.random.uniform(k1, (2, 4, 16, 16), dtype=jnp.float32)
    cl = jax.random.uniform(k2, (2, 4, 16, 16), dtype=jnp.float32)

    loss = psnr_loss(dr, cl, data_range=1.0)
    jax.block_until_ready(loss)
    ref = _ref_loss(dr, cl, 1.0)
    assert jnp.allclose(loss, ref, rtol=1e-5, atol=1e-5), (loss, ref)

    # Secondary check: ragged last block + multi-step + forced 2-core grid path.
    k3, k4 = jax.random.split(k1)
    a = jax.random.uniform(k3, (2, 4, 16, 17), dtype=jnp.float32)   # 2176 = 17*128
    b = jax.random.uniform(k4, (2, 4, 16, 17), dtype=jnp.float32)
    out = psnr_loss(a, b, data_range=2.0, block_rows=8, force_num_cores=2)
    jax.block_until_ready(out)
    ref = _ref_loss(a, b, 2.0)
    assert jnp.allclose(out, ref, rtol=1e-5, atol=1e-5), (out, ref)

    # Secondary check: non-multiple-of-128 element count + bf16 (in-kernel cast).
    k5, k6 = jax.random.split(k2)
    a2 = jax.random.uniform(k5, (3, 5, 7), dtype=jnp.bfloat16)
    b2 = jax.random.uniform(k6, (3, 5, 7), dtype=jnp.bfloat16)
    out2 = psnr_loss(a2, b2, data_range=1.0)
    jax.block_until_ready(out2)
    ref2 = _ref_loss(a2, b2, 1.0)
    assert jnp.allclose(out2, ref2, rtol=1e-4, atol=1e-4), (out2, ref2)

    print("KERNEL_OK")
</pallas_src>

<mosaic_0001>
module attributes {stable_mosaic.version = 11 : i64} {
  func.func @kernel(%arg0: i32, %arg1: i32, %arg2: memref<16x128xf32, #tpu.memory_space<vmem>>, %arg3: memref<16x128xf32, #tpu.memory_space<vmem>>, %arg4: memref<1x8x128xf32, #tpu.memory_space<vmem>>) attributes {dimension_semantics = [#tpu.dimension_semantics<parallel>, #tpu.dimension_semantics<arbitrary>], iteration_bounds = array<i64: 1, 1>, scalar_prefetch = 0 : i64, scratch_operands = 0 : i64, tpu.core_type = #tpu.core_type<tc>, window_params = [{transform_indices = @transform_0, window_bounds = array<i64: 16, 128>}, {transform_indices = @transform_1, window_bounds = array<i64: 16, 128>}, {transform_indices = @transform_2, window_bounds = array<i64: 1, 8, 128>}]} {
    %c0_i32 = arith.constant 0 : i32
    %0 = arith.cmpi eq, %arg1, %c0_i32 : i32
    %1 = arith.extui %0 : i1 to i32
    %c0_i32_0 = arith.constant 0 : i32
    %2 = arith.cmpi ne, %1, %c0_i32_0 : i32
    scf.if %2 {
      %cst_10 = arith.constant 0.000000e+00 : f32
      %13 = vector.broadcast %cst_10 : f32 to vector<1x8x128xf32>
      %c0_11 = arith.constant 0 : index
      %c0_12 = arith.constant 0 : index
      %c0_13 = arith.constant 0 : index
      %14 = vector.load %arg4[%c0_11, %c0_12, %c0_13] : memref<1x8x128xf32, #tpu.memory_space<vmem>>, vector<1x8x128xf32>
      tpu.vector_store %arg4[%c0_11, %c0_12, %c0_13], %13 {strides = array<i32>} : memref<1x8x128xf32, #tpu.memory_space<vmem>>, vector<1x8x128xf32>,
    } else {
    }
    %c0 = arith.constant 0 : index
    %c0_1 = arith.constant 0 : index
    %3 = vector.load %arg2[%c0, %c0_1] : memref<16x128xf32, #tpu.memory_space<vmem>>, vector<16x128xf32>
    %c0_2 = arith.constant 0 : index
    %c0_3 = arith.constant 0 : index
    %4 = vector.load %arg3[%c0_2, %c0_3] : memref<16x128xf32, #tpu.memory_space<vmem>>, vector<16x128xf32>
    %5 = arith.subf %3, %4 : vector<16x128xf32>
    %6 = arith.mulf %5, %5 : vector<16x128xf32>
    %c0_4 = arith.constant 0 : index
    %c0_5 = arith.constant 0 : index
    %c0_6 = arith.constant 0 : index
    %7 = vector.load %arg4[%c0_4, %c0_5, %c0_6] : memref<1x8x128xf32, #tpu.memory_space<vmem>>, vector<1x8x128xf32>
    %8 = vector.shape_cast %6 : vector<16x128xf32> to vector<2x8x128xf32>
    %cst = arith.constant dense<0.000000e+00> : vector<8x128xf32>
    %9 = vector.multi_reduction <add>, %8, %cst [0] : vector<2x8x128xf32> to vector<8x128xf32>
    %10 = vector.shape_cast %9 : vector<8x128xf32> to vector<1x8x128xf32>
    %11 = arith.addf %7, %10 : vector<1x8x128xf32>
    %c0_7 = arith.constant 0 : index
    %c0_8 = arith.constant 0 : index
    %c0_9 = arith.constant 0 : index
    %12 = vector.load %arg4[%c0_7, %c0_8, %c0_9] : memref<1x8x128xf32, #tpu.memory_space<vmem>>, vector<1x8x128xf32>
    tpu.vector_store %arg4[%c0_7, %c0_8, %c0_9], %11 {strides = array<i32>} : memref<1x8x128xf32, #tpu.memory_space<vmem>>, vector<1x8x128xf32>,
    return
  }
  func.func @transform_0(%arg0: i32, %arg1: i32) -> (i32, i32) {
    %c1_i32 = arith.constant 1 : i32
    %0 = arith.muli %arg0, %c1_i32 : i32
    %1 = arith.addi %0, %arg1 : i32
    %c0_i32 = arith.constant 0 : i32
    %c0_i32_0 = arith.constant 0 : i32
    return %1, %c0_i32 : i32, i32
  }
  func.func @transform_1(%arg0: i32, %arg1: i32) -> (i32, i32) {
    %c1_i32 = arith.constant 1 : i32
    %0 = arith.muli %arg0, %c1_i32 : i32
    %1 = arith.addi %0, %arg1 : i32
    %c0_i32 = arith.constant 0 : i32
    %c0_i32_0 = arith.constant 0 : i32
    return %1, %c0_i32 : i32, i32
  }
  func.func @transform_2(%arg0: i32, %arg1: i32) -> (i32, i32, i32) {
    %c0_i32 = arith.constant 0 : i32
    %c0_i32_0 = arith.constant 0 : i32
    %c0_i32_1 = arith.constant 0 : i32
    return %arg0, %c0_i32, %c0_i32_0 : i32, i32, i32
  }
}

</mosaic_0001>

<llo_original>
// kernel: tpu_custom_call.1
$region0: #{tpu_custom_call.1}
  #allocation0 [shape = 'u32[]', space=smem, size = 0x4, offset = 0x4, fixed_abs, tag = 'smem constant byte address 0x4 - core index']
  #allocation1 [shape = 'u32[144,128]{1,0:T(1,128)}', space=vmem, size = 0x12000, scoped, tag = 'internal scratch']
  %s0 = inlined_call_operand.hbm [shape: f32[16,128], index: 0, kind: input, shape index: {}]
  %s1 = inlined_call_operand.hbm [shape: f32[16,128], index: 1, kind: input, shape index: {}]
  %s2 = inlined_call_operand.hbm [shape: f32[1,8,128], index: 2, kind: output, shape index: {}]
  %s3 = sld [smem:[#allocation0]]
  $region30: #{tpu_custom_call.1} parent=0
    _
  %s5 = ssub.s32 1, %s3
  %s6 = scalar_select 0, %s5, %s3
  $region1: #{tpu_custom_call.1} parent=0
    #allocation2 [shape = 'u8[8192]{0}', space=vmem, size = 0x2000, scoped, tag = 'input window, operand 0, single buffered']
    #allocation3 [shape = 's32[1]{0}', space=sflag, size = 0x4, scoped, tag = 'scoped memory for tpu_custom_call.1']
    #allocation4 [shape = 's32[1]{0}', space=sflag, size = 0x4, scoped, tag = 'scoped memory for tpu_custom_call.1']
    #allocation5 [shape = 'u8[8192]{0}', space=vmem, size = 0x2000, scoped, tag = 'input window, operand 1, single buffered']
    #allocation6 [shape = 's32[1]{0}', space=sflag, size = 0x4, scoped, tag = 'scoped memory for tpu_custom_call.1']
    #allocation7 [shape = 'u8[4096]{0}', space=vmem, size = 0x1000, scoped, tag = 'output window, operand 0, single buffered']
    %7 = vsyncpa [#allocation3], 0
    %8 = vsyncpa [#allocation6], 0
    %9 = vsyncpa [#allocation4], 0
    // Predicated region
    $region2: #{tpu_custom_call.1} parent=1 // pred_check
      _
    $region3: #{tpu_custom_call.1} parent=1 // pred_check_branch
      %11 = sbr.rel (0) target = $region5
    $region4: #{tpu_custom_call.1} parent=1 // pred_region
      %s12 = sadd.s32 0, 0
      %s13 = smul.u32 2, %s12
      %s15 = ssub.s32 256, 256
      %16 = vsyncadd [#allocation3], %s15
      %s17 = smul.addr %s13, 128
      %s18 = scalar_lea.hbm %s0, %s17
      %s19 = sshll.u32 [#allocation2], 4
      %s20 = int_to_ptr.vmem [resolvable:$true] %s19
      %25 = dma.hbm_to_vmem [thread:$0]  %s18, 256, %s20, [#allocation3], 128, 128, 8
    $region5: #{tpu_custom_call.1} parent=1 // pred_fallthru
      _
    // Predicated region
    $region6: #{tpu_custom_call.1} parent=1 // pred_check
      _
    $region7: #{tpu_custom_call.1} parent=1 // pred_check_branch
      %27 = sbr.rel (0) target = $region9
    $region8: #{tpu_custom_call.1} parent=1 // pred_region
      %s28 = sadd.s32 0, 0
      %s29 = smul.u32 2, %s28
      %s31 = ssub.s32 256, 256
      %32 = vsyncadd [#allocation6], %s31
      %s33 = smul.addr %s29, 128
      %s34 = scalar_lea.hbm %s1, %s33
      %s35 = sshll.u32 [#allocation5], 4
      %s36 = int_to_ptr.vmem [resolvable:$true] %s35
      %41 = dma.hbm_to_vmem [thread:$0]  %s34, 256, %s36, [#allocation6], 128, 128, 8
    $region9: #{tpu_custom_call.1} parent=1 // pred_fallthru
      _
    // Predicated region
    $region10: #{tpu_custom_call.1} parent=1 // pred_check
      _
    $region11: #{tpu_custom_call.1} parent=1 // pred_check_branch
      %43 = sbr.rel (0) target = $region13
    $region12: #{tpu_custom_call.1} parent=1 // pred_region
      %44 = dma.done [#allocation3], 256
    $region13: #{tpu_custom_call.1} parent=1 // pred_fallthru
      _
    // Predicated region
    $region14: #{tpu_custom_call.1} parent=1 // pred_check
      _
    $region15: #{tpu_custom_call.1} parent=1 // pred_check_branch
      %46 = sbr.rel (0) target = $region17
    $region16: #{tpu_custom_call.1} parent=1 // pred_region
      %47 = dma.done [#allocation6], 256
    $region17: #{tpu_custom_call.1} parent=1 // pred_fallthru
      _
    %s48 = sadd.s32 0, 0
    %s49 = smul.u32 2, %s48
    %s50 = sadd.s32 0, 0
    %s51 = smul.u32 2, %s50
    %p52 = scmp.eq.s32.totalorder 0, 0
    // Predicated region
    $region18: #{tpu_custom_call.1} parent=1 // pred_check
      %p53 = pneg %p52
    $region19: #{tpu_custom_call.1} parent=1 // pred_check_branch
      %55 = sbr.rel (%p53) target = $region21
    $region20: #{tpu_custom_call.1} parent=1 // pred_region
      %56 = vst [vmem:[#allocation7] sm:$0xff] 0.0
    $region21: #{tpu_custom_call.1} parent=1 // pred_fallthru
      _
    %v57 = vld [vmem:[#allocation2] sm:$0xff]
    %v58 = vld [vmem:[#allocation2 + $0x8] sm:$0xff]
    %v59 = vld [vmem:[#allocation5] sm:$0xff]
    %v60 = vld [vmem:[#allocation5 + $0x8] sm:$0xff]
    %v61 = vsub.f32 %v57, %v59
    %v62 = vsub.f32 %v58, %v60
    %v63 = vmul.f32 %v61, %v61
    %v64 = vmul.f32 %v62, %v62
    %v65 = vld [vmem:[#allocation7] sm:$0xff]
    %v66 = vadd.f32 %v63, %v64
    %v67 = vadd.f32 %v65, %v66
    %68 = vst [vmem:[#allocation7] sm:$0xff] %v67
    // Predicated region
    $region22: #{tpu_custom_call.1} parent=1 // pred_check
      _
    $region23: #{tpu_custom_call.1} parent=1 // pred_check_branch
      %70 = sbr.rel (0) target = $region25
    $region24: #{tpu_custom_call.1} parent=1 // pred_region
      %s72 = ssub.s32 128, 128
      %73 = vsyncadd [#allocation4], %s72
      %s75 = sshll.u32 [#allocation7], 4
      %s76 = int_to_ptr.vmem [resolvable:$true] %s75
      %78 = dma.vmem_to_hbm [thread:$0]  %s76, 128, %s2, [#allocation4]
    $region25: #{tpu_custom_call.1} parent=1 // pred_fallthru
      _
    // Predicated region
    $region26: #{tpu_custom_call.1} parent=1 // pred_check
      _
    $region27: #{tpu_custom_call.1} parent=1 // pred_check_branch
      %80 = sbr.rel (0) target = $region29
    $region28: #{tpu_custom_call.1} parent=1 // pred_region
      %81 = dma.done [#allocation4], 128
    $region29: #{tpu_custom_call.1} parent=1 // pred_fallthru
      _
    %82 = vsyncpa [#allocation3], 1
    %83 = vsyncpa [#allocation6], 1
    %84 = vsyncpa [#allocation4], 1

</llo_original>
